<compile_context>
chip_gen: v5e
topology: v5e:2x2
jax: 0.10.0
libtpu: 0.0.40
codegen_flags: <defaults>
</compile_context>

<pallas_src>
import functools

import jax
import jax.numpy as jnp
from jax.experimental import pallas as pl
from jax.experimental.pallas import tpu as pltpu


def _cdiv(a, b):
    return (a + b - 1) // b


def _gather_kernel(ids_ref, wbd_ref, o_ref):
    """ids_ref: (tp, r) int32 (pre-shifted by j*N); wbd_ref: (r*N, r*D); o_ref: (tp, r*D)."""
    tp, r = ids_ref.shape
    rn = wbd_ref.shape[0]
    cols = jax.lax.broadcasted_iota(jnp.int32, (tp, rn), 1)       # (tp, r*N)
    # Build the packed one-hot with r broadcast-compares (disjoint supports -> OR).
    hit = ids_ref[:, 0:1] == cols
    for j in range(1, r):                                         # static unroll, r <= 16
        hit = jnp.logical_or(hit, ids_ref[:, j:j + 1] == cols)
    onehot = hit.astype(wbd_ref.dtype)                            # (tp, r*N)
    # Exact gather: each output element sums exactly one (1.0 * w) product.
    o_ref[...] = jnp.dot(
        onehot, wbd_ref[...], preferred_element_type=jnp.float32
    ).astype(o_ref.dtype)


@functools.partial(jax.jit, static_argnames=("tm", "min_rows_for_pallas"))
def embedding_ema_forward(embed_id, weight, *, tm=512, min_rows_for_pallas=512):
    """Pallas equivalent of F.embedding(embed_id, weight)."""
    orig_shape = embed_id.shape
    n_codes, d = weight.shape

    ids = embed_id.reshape(-1).astype(jnp.int32)
    ids = jnp.clip(ids, 0, n_codes - 1)            # jnp.take-style clamp for bad ids
    m = ids.shape[0]

    # Tiny calls: one XLA gather beats padding + a kernel launch.
    if m < min_rows_for_pallas:
        return jnp.take(weight, ids, axis=0).reshape(*orig_shape, d)

    # Row-packing factor: pack r rows of width D into one lane-dense 128-wide row.
    r = 128 // d if (8 <= d < 128 and 128 % d == 0) else 1
    g = 8 * r                                       # tile granularity (tp multiple of 8)

    # Row-tile selection: big tiles (fewer grid steps, bigger DMAs), but keep >= 2
    # grid steps when possible so v7x's two TensorCores both get work.
    tm_eff = max(g, min((tm // g) * g, _cdiv(m, g) * g))
    while tm_eff > 256 and _cdiv(m, tm_eff) < 2:
        tm_eff = max(g, ((tm_eff // 2) // g) * g)

    m_pad = _cdiv(m, tm_eff) * tm_eff
    ids = jnp.pad(ids, (0, m_pad - m))              # padded rows fetch row 0, sliced off
    p_rows = m_pad // r                             # packed output rows
    tp = tm_eff // r                                # packed rows per tile

    # Shift ids so packed-slot j compares against column block j of the one-hot.
    ids2 = ids.reshape(p_rows, r) + (jnp.arange(r, dtype=jnp.int32) * n_codes)[None, :]

    # Block-diagonal replicated codebook: (r*N, r*D), diagonal blocks = weight.
    eye_r = jnp.eye(r, dtype=weight.dtype)
    wbd = jnp.einsum("jk,nd->jnkd", eye_r, weight).reshape(r * n_codes, r * d)

    # TODO(synk): for large codebooks (N*D*4 >> a few MiB) add a reduction grid axis
    # over N with an f32 VMEM accumulator (and single-buffer the resident codebook)
    # instead of keeping the full block-diagonal codebook resident.
    out = pl.pallas_call(
        _gather_kernel,
        out_shape=jax.ShapeDtypeStruct((p_rows, r * d), weight.dtype),
        grid_spec=pltpu.PrefetchScalarGridSpec(
            num_scalar_prefetch=0,
            grid=(p_rows // tp,),
            in_specs=[
                pl.BlockSpec((tp, r), lambda i: (i, 0)),               # shifted ids tile
                pl.BlockSpec((r * n_codes, r * d), lambda i: (0, 0)),  # resident codebook
            ],
            out_specs=pl.BlockSpec((tp, r * d), lambda i: (i, 0)),     # lane-dense slab
        ),
        compiler_params=pltpu.CompilerParams(
            dimension_semantics=("parallel",),
            vmem_limit_bytes=64 * 1024 * 1024,
        ),
    )(ids2, wbd)

    return out.reshape(m_pad, d)[:m].reshape(*orig_shape, d)


class EmbeddingEMA:
    """JAX mirror of the PyTorch EmbeddingEMA module (forward only uses `weight`)."""

    def __init__(self, num_codebook_entries, codebook_entry_dim,
                 decay=0.99, eps=1e-5, key=None):
        self.decay = decay
        self.eps = eps
        if key is None:
            key = jax.random.PRNGKey(0)
        weight = jax.random.normal(
            key, (num_codebook_entries, codebook_entry_dim), dtype=jnp.float32)
        self.weight = weight
        self.cluster_size = jnp.zeros((num_codebook_entries,), jnp.float32)
        self.embed_avg = weight.astype(jnp.float32)
        # TODO(synk): EMA update methods (cluster_size_ema_update / embed_avg_ema_update /
        # weight_update) are training-time state updates, not part of forward; omitted here.

    def __call__(self, embed_id):
        return embedding_ema_forward(embed_id, self.weight)


if __name__ == "__main__":
    key = jax.random.PRNGKey(0)
    k_w, k_id = jax.random.split(key)

    num_codebook_entries = 64
    codebook_entry_dim = 32
    batch, seq = 2, 512   # M = 1024 rows -> exercises the Pallas path (2 grid steps)

    module = EmbeddingEMA(num_codebook_entries, codebook_entry_dim, key=k_w)
    embed_id = jax.random.randint(
        k_id, (batch, seq), 0, num_codebook_entries, dtype=jnp.int32)

    out = module(embed_id)
    out = jax.block_until_ready(out)

    # Reference check: plain JAX gather == F.embedding semantics.
    ref = jnp.take(module.weight, embed_id, axis=0)
    assert out.shape == (batch, seq, codebook_entry_dim), out.shape
    assert out.dtype == jnp.float32, out.dtype
    assert jnp.allclose(out, ref, atol=1e-6), "mismatch vs reference gather"

    print("KERNEL_OK")
</pallas_src>

<mosaic_0001>
module attributes {stable_mosaic.version = 11 : i64} {
  func.func @_gather_kernel(%arg0: i32, %arg1: memref<128x4xi32, #tpu.memory_space<vmem>>, %arg2: memref<256x128xf32, #tpu.memory_space<vmem>>, %arg3: memref<128x128xf32, #tpu.memory_space<vmem>>) attributes {dimension_semantics = [#tpu.dimension_semantics<parallel>], iteration_bounds = array<i64: 2>, scalar_prefetch = 0 : i64, scratch_operands = 0 : i64, tpu.core_type = #tpu.core_type<tc>, window_params = [{transform_indices = @transform_0, window_bounds = array<i64: 128, 4>}, {pipeline_mode = #tpu.pipeline_mode<synchronous>, transform_indices = @transform_1, window_bounds = array<i64: 256, 128>}, {transform_indices = @transform_2, window_bounds = array<i64: 128, 128>}]} {
    %0 = tpu.iota {dimensions = array<i32: 1>} : vector<128x256xi32>
    %c0 = arith.constant 0 : index
    %c0_0 = arith.constant 0 : index
    %1 = vector.load %arg1[%c0, %c0_0] : memref<128x4xi32, #tpu.memory_space<vmem>>, vector<128x1xi32>
    %2 = vector.broadcast %1 : vector<128x1xi32> to vector<128x256xi32>
    %3 = arith.cmpi eq, %2, %0 : vector<128x256xi32>
    %c0_1 = arith.constant 0 : index
    %c1 = arith.constant 1 : index
    %4 = vector.load %arg1[%c0_1, %c1] : memref<128x4xi32, #tpu.memory_space<vmem>>, vector<128x1xi32>
    %5 = vector.broadcast %4 : vector<128x1xi32> to vector<128x256xi32>
    %6 = arith.cmpi eq, %5, %0 : vector<128x256xi32>
    %7 = arith.ori %3, %6 : vector<128x256xi1>
    %c0_2 = arith.constant 0 : index
    %c2 = arith.constant 2 : index
    %8 = vector.load %arg1[%c0_2, %c2] : memref<128x4xi32, #tpu.memory_space<vmem>>, vector<128x1xi32>
    %9 = vector.broadcast %8 : vector<128x1xi32> to vector<128x256xi32>
    %10 = arith.cmpi eq, %9, %0 : vector<128x256xi32>
    %11 = arith.ori %7, %10 : vector<128x256xi1>
    %c0_3 = arith.constant 0 : index
    %c3 = arith.constant 3 : index
    %12 = vector.load %arg1[%c0_3, %c3] : memref<128x4xi32, #tpu.memory_space<vmem>>, vector<128x1xi32>
    %13 = vector.broadcast %12 : vector<128x1xi32> to vector<128x256xi32>
    %14 = arith.cmpi eq, %13, %0 : vector<128x256xi32>
    %15 = arith.ori %11, %14 : vector<128x256xi1>
    %16 = arith.extui %15 : vector<128x256xi1> to vector<128x256xi32>
    %17 = arith.sitofp %16 : vector<128x256xi32> to vector<128x256xf32>
    %c0_4 = arith.constant 0 : index
    %c0_5 = arith.constant 0 : index
    %18 = vector.load %arg2[%c0_4, %c0_5] : memref<256x128xf32, #tpu.memory_space<vmem>>, vector<256x128xf32>
    %cst = arith.constant dense<0.000000e+00> : vector<128x128xf32>
    %19 = tpu.matmul %17, %18, %cst {dimension_numbers = #tpu.dot_dimension_numbers<[1], [0], [0], [1], [0, 0, 1, 1], [], []>} : vector<128x256xf32>, vector<256x128xf32>, vector<128x128xf32> -> vector<128x128xf32>
    %c0_6 = arith.constant 0 : index
    %c0_7 = arith.constant 0 : index
    %20 = vector.load %arg3[%c0_6, %c0_7] : memref<128x128xf32, #tpu.memory_space<vmem>>, vector<128x128xf32>
    tpu.vector_store %arg3[%c0_6, %c0_7], %19 {strides = array<i32>} : memref<128x128xf32, #tpu.memory_space<vmem>>, vector<128x128xf32>,
    return
  }
  func.func @transform_0(%arg0: i32) -> (i32, i32) {
    %c0_i32 = arith.constant 0 : i32
    %c0_i32_0 = arith.constant 0 : i32
    return %arg0, %c0_i32 : i32, i32
  }
  func.func @transform_1(%arg0: i32) -> (i32, i32) {
    %c0_i32 = arith.constant 0 : i32
    %c0_i32_0 = arith.constant 0 : i32
    %c0_i32_1 = arith.constant 0 : i32
    return %c0_i32, %c0_i32_0 : i32, i32
  }
  func.func @transform_2(%arg0: i32) -> (i32, i32) {
    %c0_i32 = arith.constant 0 : i32
    %c0_i32_0 = arith.constant 0 : i32
    return %arg0, %c0_i32 : i32, i32
  }
}

</mosaic_0001>

<llo_original>
// kernel: embedding_ema_forward.1
$region0: #{embedding_ema_forward.1}
  #allocation0 [shape = 'u32[]', space=smem, size = 0x4, offset = 0x4, fixed_abs, tag = 'smem constant byte address 0x4 - core index']
  #allocation1 [shape = 'u32[72,128]{1,0:T(1,128)}', space=vmem, size = 0x9000, scoped, tag = 'internal scratch']
  %s0 = inlined_call_operand.vmem [shape: s32[256,4], index: 0, kind: input, shape index: {}]
  %s1 = inlined_call_operand.vmem [shape: f32[256,128], index: 1, kind: input, shape index: {}]
  %s2 = inlined_call_operand.vmem [shape: f32[256,128], index: 2, kind: output, shape index: {}]
  %s3 = sld [smem:[#allocation0]]
  $region41: #{embedding_ema_forward.1} parent=0
    _
  %s5 = ssub.s32 1, %s3
  %s6 = scalar_select 0, %s5, %s3
  loop: start=0, step=1, limit=4
  $region2: #{embedding_ema_forward.1} parent=0 // loop_pre_header
    _
  $region3: #{embedding_ema_forward.1} parent=0 // loop_header
    %s8 = sphi 0, %s12
    %p9 = scmp.ge.s32.totalorder %s8, 4
    %s18 = sphi 0, %s20
    %s21 = sphi 0, %s18
    %s22 = sphi 0, %s21
    %s38 = sphi 0, %s22
    %s42 = sphi 0, %s42
    %s44 = sphi 0, %s42
    %s45 = sphi 0, %s44
    %s59 = sphi 0, %s45
    %s65 = sphi 0, %s67
    %s68 = sphi 0, %s65
    %s69 = sphi 0, %s68
    %s85 = sphi 0, %s69
  $region4: #{embedding_ema_forward.1} parent=0 // loop_header_branch
    %11 = sbr.rel (%p9) target = $region8
  $region5: #{embedding_ema_forward.1} parent=0 // loop_body
    %s13 = ssub.s32 %s8, 1
    %s14 = ssub.s32 %s8, 2
    %s15 = sadd.s32 %s8, 1
    %s16 = ssub.s32 %s8, %s15
    %p17 = scmp.eq.s32.totalorder %s16, 0
    %s19 = sadd.s32 %s18, 1
    %s20 = scalar_select %p17, %s18, %s19
    %p23 = pneg %p17
    %p24 = scmp.eq.s32.totalorder %s8, 1
    %p25 = por %p23, %p24
    %p26 = scmp.ne.s32.totalorder %s18, %s21
    %p27 = scmp.eq.s32.totalorder %s8, 0
    %p28 = por %p26, %p27
    %p29 = scmp.ne.s32.totalorder %s18, %s21
    %p30 = scmp.eq.s32.totalorder %s13, 1
    %p31 = por %p29, %p30
    %p32 = scmp.ne.s32.totalorder %s21, %s22
    %p33 = scmp.eq.s32.totalorder %s13, 0
    %p34 = por %p32, %p33
    %p35 = scmp.ne.s32.totalorder %s21, %s22
    %p36 = scmp.eq.s32.totalorder %s14, 1
    %p37 = por %p35, %p36
    %p39 = scmp.ne.s32.totalorder %s22, %s38
    %p40 = scmp.eq.s32.totalorder %s14, 0
    %p41 = por %p39, %p40
    %s43 = sadd.s32 %s42, 1
    %p46 = scmp.eq.s32.totalorder %s8, 1
    %p47 = scmp.ne.s32.totalorder %s42, %s44
    %p48 = scmp.eq.s32.totalorder %s8, 0
    %p49 = por %p47, %p48
    %p50 = scmp.ne.s32.totalorder %s42, %s44
    %p51 = scmp.eq.s32.totalorder %s13, 1
    %p52 = por %p50, %p51
    %p53 = scmp.ne.s32.totalorder %s44, %s45
    %p54 = scmp.eq.s32.totalorder %s13, 0
    %p55 = por %p53, %p54
    %p56 = scmp.ne.s32.totalorder %s44, %s45
    %p57 = scmp.eq.s32.totalorder %s14, 1
    %p58 = por %p56, %p57
    %p60 = scmp.ne.s32.totalorder %s45, %s59
    %p61 = scmp.eq.s32.totalorder %s14, 0
    %p62 = por %p60, %p61
    %s63 = ssub.s32 %s8, %s15
    %p64 = scmp.eq.s32.totalorder %s63, 0
    %s66 = sadd.s32 %s65, 1
    %s67 = scalar_select %p64, %s65, %s66
    %p70 = pneg %p64
    %p71 = scmp.eq.s32.totalorder %s8, 1
    %p72 = por %p70, %p71
    %p73 = scmp.ne.s32.totalorder %s65, %s68
    %p74 = scmp.eq.s32.totalorder %s8, 0
    %p75 = por %p73, %p74
    %p76 = scmp.ne.s32.totalorder %s65, %s68
    %p77 = scmp.eq.s32.totalorder %s13, 1
    %p78 = por %p76, %p77
    %p79 = scmp.ne.s32.totalorder %s68, %s69
    %p80 = scmp.eq.s32.totalorder %s13, 0
    %p81 = por %p79, %p80
    %p82 = scmp.ne.s32.totalorder %s68, %s69
    %p83 = scmp.eq.s32.totalorder %s14, 1
    %p84 = por %p82, %p83
    %p86 = scmp.ne.s32.totalorder %s69, %s85
    %p87 = scmp.eq.s32.totalorder %s14, 0
    %p88 = por %p86, %p87
    %p89 = scmp.le.s32.totalorder 1, %s8
    %p90 = scmp.lt.s32.totalorder %s8, 3
    %p91 = pnand %p89, %p90
    %p92 = pneg %p91
    // Predicated region
    $region9: #{embedding_ema_forward.1} parent=5 // pred_check
      _
    $region10: #{embedding_ema_forward.1} parent=5 // pred_check_branch
      %94 = sbr.rel (%p91) target = $region12
    $region11: #{embedding_ema_forward.1} parent=5 // pred_region
      %s95 = ssub.s32 %s8, 1
      // Predicated region
      $region13: #{embedding_ema_forward.1} parent=11 // pred_check
        %p96 = pneg %p55
      $region14: #{embedding_ema_forward.1} parent=11 // pred_check_branch
        %98 = sbr.rel (%p96) target = $region16
      $region15: #{embedding_ema_forward.1} parent=11 // pred_region
        _
      $region16: #{embedding_ema_forward.1} parent=11 // pred_fallthru
        _
    $region12: #{embedding_ema_forward.1} parent=5 // pred_fallthru
      _
    %p99 = scmp.lt.s32.totalorder %s8, 2
    // Predicated region
    $region17: #{embedding_ema_forward.1} parent=5 // pred_check
      %p100 = pneg %p99
    $region18: #{embedding_ema_forward.1} parent=5 // pred_check_branch
      %102 = sbr.rel (%p100) target = $region20
    $region19: #{embedding_ema_forward.1} parent=5 // pred_region
      // Predicated region
      $region21: #{embedding_ema_forward.1} parent=19 // pred_check
        %p103 = pneg %p28
      $region22: #{embedding_ema_forward.1} parent=19 // pred_check_branch
        %105 = sbr.rel (%p103) target = $region24
      $region23: #{embedding_ema_forward.1} parent=19 // pred_region
        %s106 = smul.u32 16, %s8
        %p107 = scmp.lt.s32.totalorder %s106, 31
        %s108 = scalar_select %p107, %s106, 31
        %s109 = smul.addr %s108, 8
        %s110 = scalar_lea.vmem %s0, %s109
        %s111 = smul.u32 16, %s8
      $region24: #{embedding_ema_forward.1} parent=19 // pred_fallthru
        _
    $region20: #{embedding_ema_forward.1} parent=5 // pred_fallthru
      _
    %p112 = scmp.le.s32.totalorder 1, %s8
    %p113 = scmp.lt.s32.totalorder %s8, 3
    %p114 = pnand %p112, %p113
    %p115 = pneg %p114
    // Predicated region
    $region25: #{embedding_ema_forward.1} parent=5 // pred_check
      _
    $region26: #{embedding_ema_forward.1} parent=5 // pred_check_branch
      %117 = sbr.rel (%p114) target = $region28
    $region27: #{embedding_ema_forward.1} parent=5 // pred_region
      %s118 = ssub.s32 %s8, 1
      %s119 = smul.u32 16, %s13
      %p120 = scmp.lt.s32.totalorder %s119, 31
      %s121 = scalar_select %p120, %s119, 31
      %s122 = smul.addr %s121, 8
      %s123 = scalar_lea.vmem %s0, %s122
      %p124 = pneg %p34
      %p125 = pneg %p31
      %p126 = pneg %p55
      %p127 = pneg %p52
      %p128 = pneg %p81
      %p129 = pneg %p78
      %s130 = smul.u32 16, %s13
      %p131 = scmp.lt.s32.totalorder %s130, 31
      %s132 = scalar_select %p131, %s130, 31
      %s133 = smul.addr %s132, 8
      %s134 = scalar_lea.vmem %s2, %s133
      %s135 = smul.u32 16, %s13
      %p136 = scmp.lt.s32.totalorder %s135, 31
      %s137 = scalar_select %p136, %s135, 31
      %s138 = smul.addr %s137, 8
      %s139 = scalar_lea.vmem %s0, %s138
      %s140 = smul.u32 16, %s13
      %s141 = smul.u32 16, %s13
      %p142 = scmp.lt.s32.totalorder %s141, 31
      %s143 = scalar_select %p142, %s141, 31
      %s144 = smul.addr %s143, 8
      %s145 = scalar_lea.vmem %s2, %s144
      %s146 = smul.u32 16, %s13
      %v147 = vlaneseq
      %v148 = vand.u32 %v147, 127
      %v149 = vadd.s32 %v148, 128
      %v150 = vld [vmem:[%s139] sm:$0xff]
      %v151 = vld [vmem:[%s139 + $0x8] sm:$0xff]
      %v152 = vld [vmem:[%s139 + $0x10] sm:$0xff]
      %v153 = vld [vmem:[%s139 + $0x18] sm:$0xff]
      %v154 = vld [vmem:[%s139 + $0x20] sm:$0xff]
      %v155 = vld [vmem:[%s139 + $0x28] sm:$0xff]
      %v156 = vld [vmem:[%s139 + $0x30] sm:$0xff]
      %v157 = vld [vmem:[%s139 + $0x38] sm:$0xff]
      %v158 = vld [vmem:[%s139 + $0x40] sm:$0xff]
      %v159 = vld [vmem:[%s139 + $0x48] sm:$0xff]
      %v160 = vld [vmem:[%s139 + $0x50] sm:$0xff]
      %v161 = vld [vmem:[%s139 + $0x58] sm:$0xff]
      %v162 = vld [vmem:[%s139 + $0x60] sm:$0xff]
      %v163 = vld [vmem:[%s139 + $0x68] sm:$0xff]
      %v164 = vld [vmem:[%s139 + $0x70] sm:$0xff]
      %v165 = vld [vmem:[%s139 + $0x78] sm:$0xff]
      %166 = vset.pattern.permute.xlu0 0
      %167 = vperm.xlu0 %166, %v150
      %v168 = vpop.permute.xlu0 %167
      %169 = vset.pattern.permute.xlu0 0
      %170 = vperm.xlu0 %169, %v151
      %v171 = vpop.permute.xlu0 %170
      %172 = vset.pattern.permute.xlu0 0
      %173 = vperm.xlu0 %172, %v152
      %v174 = vpop.permute.xlu0 %173
      %175 = vset.pattern.permute.xlu0 0
      %176 = vperm.xlu0 %175, %v153
      %v177 = vpop.permute.xlu0 %176
      %178 = vset.pattern.permute.xlu0 0
      %179 = vperm.xlu0 %178, %v154
      %v180 = vpop.permute.xlu0 %179
      %181 = vset.pattern.permute.xlu0 0
      %182 = vperm.xlu0 %181, %v155
      %v183 = vpop.permute.xlu0 %182
      %184 = vset.pattern.permute.xlu0 0
      %185 = vperm.xlu0 %184, %v156
      %v186 = vpop.permute.xlu0 %185
      %187 = vset.pattern.permute.xlu0 0
      %188 = vperm.xlu0 %187, %v157
      %v189 = vpop.permute.xlu0 %188
      %190 = vset.pattern.permute.xlu0 0
      %191 = vperm.xlu0 %190, %v158
      %v192 = vpop.permute.xlu0 %191
      %193 = vset.pattern.permute.xlu0 0
      %194 = vperm.xlu0 %193, %v159
      %v195 = vpop.permute.xlu0 %194
      %196 = vset.pattern.permute.xlu0 0
      %197 = vperm.xlu0 %196, %v160
      %v198 = vpop.permute.xlu0 %197
      %199 = vset.pattern.permute.xlu0 0
      %200 = vperm.xlu0 %199, %v161
      %v201 = vpop.permute.xlu0 %200
      %202 = vset.pattern.permute.xlu0 0
      %203 = vperm.xlu0 %202, %v162
      %v204 = vpop.permute.xlu0 %203
      %205 = vset.pattern.permute.xlu0 0
      %206 = vperm.xlu0 %205, %v163
      %v207 = vpop.permute.xlu0 %206
      %208 = vset.pattern.permute.xlu0 0
      %209 = vperm.xlu0 %208, %v164
      %v210 = vpop.permute.xlu0 %209
      %211 = vset.pattern.permute.xlu0 0
      %212 = vperm.xlu0 %211, %v165
      %v213 = vpop.permute.xlu0 %212
      %vm214 = vcmp.eq.s32.totalorder %v168, %v148
      %vm215 = vcmp.eq.s32.totalorder %v168, %v149
      %vm216 = vcmp.eq.s32.totalorder %v171, %v148
      %vm217 = vcmp.eq.s32.totalorder %v171, %v149
      %vm218 = vcmp.eq.s32.totalorder %v174, %v148
      %vm219 = vcmp.eq.s32.totalorder %v174, %v149
      %vm220 = vcmp.eq.s32.totalorder %v177, %v148
      %vm221 = vcmp.eq.s32.totalorder %v177, %v149
      %vm222 = vcmp.eq.s32.totalorder %v180, %v148
      %vm223 = vcmp.eq.s32.totalorder %v180, %v149
      %vm224 = vcmp.eq.s32.totalorder %v183, %v148
      %vm225 = vcmp.eq.s32.totalorder %v183, %v149
      %vm226 = vcmp.eq.s32.totalorder %v186, %v148
      %vm227 = vcmp.eq.s32.totalorder %v186, %v149
      %vm228 = vcmp.eq.s32.totalorder %v189, %v148
      %vm229 = vcmp.eq.s32.totalorder %v189, %v149
      %vm230 = vcmp.eq.s32.totalorder %v192, %v148
      %vm231 = vcmp.eq.s32.totalorder %v192, %v149
      %vm232 = vcmp.eq.s32.totalorder %v195, %v148
      %vm233 = vcmp.eq.s32.totalorder %v195, %v149
      %vm234 = vcmp.eq.s32.totalorder %v198, %v148
      %vm235 = vcmp.eq.s32.totalorder %v198, %v149
      %vm236 = vcmp.eq.s32.totalorder %v201, %v148
      %vm237 = vcmp.eq.s32.totalorder %v201, %v149
      %vm238 = vcmp.eq.s32.totalorder %v204, %v148
      %vm239 = vcmp.eq.s32.totalorder %v204, %v149
      %vm240 = vcmp.eq.s32.totalorder %v207, %v148
      %vm241 = vcmp.eq.s32.totalorder %v207, %v149
      %vm242 = vcmp.eq.s32.totalorder %v210, %v148
      %vm243 = vcmp.eq.s32.totalorder %v210, %v149
      %vm244 = vcmp.eq.s32.totalorder %v213, %v148
      %vm245 = vcmp.eq.s32.totalorder %v213, %v149
      %246 = vset.pattern.permute.xlu0 1
      %247 = vperm.xlu0 %246, %v150
      %v248 = vpop.permute.xlu0 %247
      %249 = vset.pattern.permute.xlu0 1
      %250 = vperm.xlu0 %249, %v151
      %v251 = vpop.permute.xlu0 %250
      %252 = vset.pattern.permute.xlu0 1
      %253 = vperm.xlu0 %252, %v152
      %v254 = vpop.permute.xlu0 %253
      %255 = vset.pattern.permute.xlu0 1
      %256 = vperm.xlu0 %255, %v153
      %v257 = vpop.permute.xlu0 %256
      %258 = vset.pattern.permute.xlu0 1
      %259 = vperm.xlu0 %258, %v154
      %v260 = vpop.permute.xlu0 %259
      %261 = vset.pattern.permute.xlu0 1
      %262 = vperm.xlu0 %261, %v155
      %v263 = vpop.permute.xlu0 %262
      %264 = vset.pattern.permute.xlu0 1
      %265 = vperm.xlu0 %264, %v156
      %v266 = vpop.permute.xlu0 %265
      %267 = vset.pattern.permute.xlu0 1
      %268 = vperm.xlu0 %267, %v157
      %v269 = vpop.permute.xlu0 %268
      %270 = vset.pattern.permute.xlu0 1
      %271 = vperm.xlu0 %270, %v158
      %v272 = vpop.permute.xlu0 %271
      %273 = vset.pattern.permute.xlu0 1
      %274 = vperm.xlu0 %273, %v159
      %v275 = vpop.permute.xlu0 %274
      %276 = vset.pattern.permute.xlu0 1
      %277 = vperm.xlu0 %276, %v160
      %v278 = vpop.permute.xlu0 %277
      %279 = vset.pattern.permute.xlu0 1
      %280 = vperm.xlu0 %279, %v161
      %v281 = vpop.permute.xlu0 %280
      %282 = vset.pattern.permute.xlu0 1
      %283 = vperm.xlu0 %282, %v162
      %v284 = vpop.permute.xlu0 %283
      %285 = vset.pattern.permute.xlu0 1
      %286 = vperm.xlu0 %285, %v163
      %v287 = vpop.permute.xlu0 %286
      %288 = vset.pattern.permute.xlu0 1
      %289 = vperm.xlu0 %288, %v164
      %v290 = vpop.permute.xlu0 %289
      %291 = vset.pattern.permute.xlu0 1
      %292 = vperm.xlu0 %291, %v165
      %v293 = vpop.permute.xlu0 %292
      %vm294 = vcmp.eq.s32.totalorder %v248, %v148
      %vm295 = vcmp.eq.s32.totalorder %v248, %v149
      %vm296 = vcmp.eq.s32.totalorder %v251, %v148
      %vm297 = vcmp.eq.s32.totalorder %v251, %v149
      %vm298 = vcmp.eq.s32.totalorder %v254, %v148
      %vm299 = vcmp.eq.s32.totalorder %v254, %v149
      %vm300 = vcmp.eq.s32.totalorder %v257, %v148
      %vm301 = vcmp.eq.s32.totalorder %v257, %v149
      %vm302 = vcmp.eq.s32.totalorder %v260, %v148
      %vm303 = vcmp.eq.s32.totalorder %v260, %v149
      %vm304 = vcmp.eq.s32.totalorder %v263, %v148
      %vm305 = vcmp.eq.s32.totalorder %v263, %v149
      %vm306 = vcmp.eq.s32.totalorder %v266, %v148
      %vm307 = vcmp.eq.s32.totalorder %v266, %v149
      %vm308 = vcmp.eq.s32.totalorder %v269, %v148
      %vm309 = vcmp.eq.s32.totalorder %v269, %v149
      %vm310 = vcmp.eq.s32.totalorder %v272, %v148
      %vm311 = vcmp.eq.s32.totalorder %v272, %v149
      %vm312 = vcmp.eq.s32.totalorder %v275, %v148
      %vm313 = vcmp.eq.s32.totalorder %v275, %v149
      %vm314 = vcmp.eq.s32.totalorder %v278, %v148
      %vm315 = vcmp.eq.s32.totalorder %v278, %v149
      %vm316 = vcmp.eq.s32.totalorder %v281, %v148
      %vm317 = vcmp.eq.s32.totalorder %v281, %v149
      %vm318 = vcmp.eq.s32.totalorder %v284, %v148
      %vm319 = vcmp.eq.s32.totalorder %v284, %v149
      %vm320 = vcmp.eq.s32.totalorder %v287, %v148
      %vm321 = vcmp.eq.s32.totalorder %v287, %v149
      %vm322 = vcmp.eq.s32.totalorder %v290, %v148
      %vm323 = vcmp.eq.s32.totalorder %v290, %v149
      %vm324 = vcmp.eq.s32.totalorder %v293, %v148
      %vm325 = vcmp.eq.s32.totalorder %v293, %v149
      %vm326 = vmor %vm214, %vm294
      %vm327 = vmor %vm215, %vm295
      %vm328 = vmor %vm216, %vm296
      %vm329 = vmor %vm217, %vm297
      %vm330 = vmor %vm218, %vm298
      %vm331 = vmor %vm219, %vm299
      %vm332 = vmor %vm220, %vm300
      %vm333 = vmor %vm221, %vm301
      %vm334 = vmor %vm222, %vm302
      %vm335 = vmor %vm223, %vm303
      %vm336 = vmor %vm224, %vm304
      %vm337 = vmor %vm225, %vm305
      %vm338 = vmor %vm226, %vm306
      %vm339 = vmor %vm227, %vm307
      %vm340 = vmor %vm228, %vm308
      %vm341 = vmor %vm229, %vm309
      %vm342 = vmor %vm230, %vm310
      %vm343 = vmor %vm231, %vm311
      %vm344 = vmor %vm232, %vm312
      %vm345 = vmor %vm233, %vm313
      %vm346 = vmor %vm234, %vm314
      %vm347 = vmor %vm235, %vm315
      %vm348 = vmor %vm236, %vm316
      %vm349 = vmor %vm237, %vm317
      %vm350 = vmor %vm238, %vm318
      %vm351 = vmor %vm239, %vm319
      %vm352 = vmor %vm240, %vm320
      %vm353 = vmor %vm241, %vm321
      %vm354 = vmor %vm242, %vm322
      %vm355 = vmor %vm243, %vm323
      %vm356 = vmor %vm244, %vm324
      %vm357 = vmor %vm245, %vm325
      %358 = vset.pattern.permute.xlu0 2
      %359 = vperm.xlu0 %358, %v150
      %v360 = vpop.permute.xlu0 %359
      %361 = vset.pattern.permute.xlu0 2
      %362 = vperm.xlu0 %361, %v151
      %v363 = vpop.permute.xlu0 %362
      %364 = vset.pattern.permute.xlu0 2
      %365 = vperm.xlu0 %364, %v152
      %v366 = vpop.permute.xlu0 %365
      %367 = vset.pattern.permute.xlu0 2
      %368 = vperm.xlu0 %367, %v153
      %v369 = vpop.permute.xlu0 %368
      %370 = vset.pattern.permute.xlu0 2
      %371 = vperm.xlu0 %370, %v154
      %v372 = vpop.permute.xlu0 %371
      %373 = vset.pattern.permute.xlu0 2
      %374 = vperm.xlu0 %373, %v155
      %v375 = vpop.permute.xlu0 %374
      %376 = vset.pattern.permute.xlu0 2
      %377 = vperm.xlu0 %376, %v156
      %v378 = vpop.permute.xlu0 %377
      %379 = vset.pattern.permute.xlu0 2
      %380 = vperm.xlu0 %379, %v157
      %v381 = vpop.permute.xlu0 %380
      %382 = vset.pattern.permute.xlu0 2
      %383 = vperm.xlu0 %382, %v158
      %v384 = vpop.permute.xlu0 %383
      %385 = vset.pattern.permute.xlu0 2
      %386 = vperm.xlu0 %385, %v159
      %v387 = vpop.permute.xlu0 %386
      %388 = vset.pattern.permute.xlu0 2
      %389 = vperm.xlu0 %388, %v160
      %v390 = vpop.permute.xlu0 %389
      %391 = vset.pattern.permute.xlu0 2
      %392 = vperm.xlu0 %391, %v161
      %v393 = vpop.permute.xlu0 %392
      %394 = vset.pattern.permute.xlu0 2
      %395 = vperm.xlu0 %394, %v162
      %v396 = vpop.permute.xlu0 %395
      %397 = vset.pattern.permute.xlu0 2
      %398 = vperm.xlu0 %397, %v163
      %v399 = vpop.permute.xlu0 %398
      %400 = vset.pattern.permute.xlu0 2
      %401 = vperm.xlu0 %400, %v164
      %v402 = vpop.permute.xlu0 %401
      %403 = vset.pattern.permute.xlu0 2
      %404 = vperm.xlu0 %403, %v165
      %v405 = vpop.permute.xlu0 %404
      %vm406 = vcmp.eq.s32.totalorder %v360, %v148
      %vm407 = vcmp.eq.s32.totalorder %v360, %v149
      %vm408 = vcmp.eq.s32.totalorder %v363, %v148
      %vm409 = vcmp.eq.s32.totalorder %v363, %v149
      %vm410 = vcmp.eq.s32.totalorder %v366, %v148
      %vm411 = vcmp.eq.s32.totalorder %v366, %v149
      %vm412 = vcmp.eq.s32.totalorder %v369, %v148
      %vm413 = vcmp.eq.s32.totalorder %v369, %v149
      %vm414 = vcmp.eq.s32.totalorder %v372, %v148
      %vm415 = vcmp.eq.s32.totalorder %v372, %v149
      %vm416 = vcmp.eq.s32.totalorder %v375, %v148
      %vm417 = vcmp.eq.s32.totalorder %v375, %v149
      %vm418 = vcmp.eq.s32.totalorder %v378, %v148
      %vm419 = vcmp.eq.s32.totalorder %v378, %v149
      %vm420 = vcmp.eq.s32.totalorder %v381, %v148
      %vm421 = vcmp.eq.s32.totalorder %v381, %v149
      %vm422 = vcmp.eq.s32.totalorder %v384, %v148
      %vm423 = vcmp.eq.s32.totalorder %v384, %v149
      %vm424 = vcmp.eq.s32.totalorder %v387, %v148
      %vm425 = vcmp.eq.s32.totalorder %v387, %v149
      %vm426 = vcmp.eq.s32.totalorder %v390, %v148
      %vm427 = vcmp.eq.s32.totalorder %v390, %v149
      %vm428 = vcmp.eq.s32.totalorder %v393, %v148
      %vm429 = vcmp.eq.s32.totalorder %v393, %v149
      %vm430 = vcmp.eq.s32.totalorder %v396, %v148
      %vm431 = vcmp.eq.s32.totalorder %v396, %v149
      %vm432 = vcmp.eq.s32.totalorder %v399, %v148
      %vm433 = vcmp.eq.s32.totalorder %v399, %v149
      %vm434 = vcmp.eq.s32.totalorder %v402, %v148
      %vm435 = vcmp.eq.s32.totalorder %v402, %v149
      %vm436 = vcmp.eq.s32.totalorder %v405, %v148
      %vm437 = vcmp.eq.s32.totalorder %v405, %v149
      %vm438 = vmor %vm326, %vm406
      %vm439 = vmor %vm327, %vm407
      %vm440 = vmor %vm328, %vm408
      %vm441 = vmor %vm329, %vm409
      %vm442 = vmor %vm330, %vm410
      %vm443 = vmor %vm331, %vm411
      %vm444 = vmor %vm332, %vm412
      %vm445 = vmor %vm333, %vm413
      %vm446 = vmor %vm334, %vm414
      %vm447 = vmor %vm335, %vm415
      %vm448 = vmor %vm336, %vm416
      %vm449 = vmor %vm337, %vm417
      %vm450 = vmor %vm338, %vm418
      %vm451 = vmor %vm339, %vm419
      %vm452 = vmor %vm340, %vm420
      %vm453 = vmor %vm341, %vm421
      %vm454 = vmor %vm342, %vm422
      %vm455 = vmor %vm343, %vm423
      %vm456 = vmor %vm344, %vm424
      %vm457 = vmor %vm345, %vm425
      %vm458 = vmor %vm346, %vm426
      %vm459 = vmor %vm347, %vm427
      %vm460 = vmor %vm348, %vm428
      %vm461 = vmor %vm349, %vm429
      %vm462 = vmor %vm350, %vm430
      %vm463 = vmor %vm351, %vm431
      %vm464 = vmor %vm352, %vm432
      %vm465 = vmor %vm353, %vm433
      %vm466 = vmor %vm354, %vm434
      %vm467 = vmor %vm355, %vm435
      %vm468 = vmor %vm356, %vm436
      %vm469 = vmor %vm357, %vm437
      %470 = vset.pattern.permute.xlu0 3
      %471 = vperm.xlu0 %470, %v150
      %v472 = vpop.permute.xlu0 %471
      %473 = vset.pattern.permute.xlu0 3
      %474 = vperm.xlu0 %473, %v151
      %v475 = vpop.permute.xlu0 %474
      %476 = vset.pattern.permute.xlu0 3
      %477 = vperm.xlu0 %476, %v152
      %v478 = vpop.permute.xlu0 %477
      %479 = vset.pattern.permute.xlu0 3
      %480 = vperm.xlu0 %479, %v153
      %v481 = vpop.permute.xlu0 %480
      %482 = vset.pattern.permute.xlu0 3
      %483 = vperm.xlu0 %482, %v154
      %v484 = vpop.permute.xlu0 %483
      %485 = vset.pattern.permute.xlu0 3
      %486 = vperm.xlu0 %485, %v155
      %v487 = vpop.permute.xlu0 %486
      %488 = vset.pattern.permute.xlu0 3
      %489 = vperm.xlu0 %488, %v156
      %v490 = vpop.permute.xlu0 %489
      %491 = vset.pattern.permute.xlu0 3
      %492 = vperm.xlu0 %491, %v157
      %v493 = vpop.permute.xlu0 %492
      %494 = vset.pattern.permute.xlu0 3
      %495 = vperm.xlu0 %494, %v158
      %v496 = vpop.permute.xlu0 %495
      %497 = vset.pattern.permute.xlu0 3
      %498 = vperm.xlu0 %497, %v159
      %v499 = vpop.permute.xlu0 %498
      %500 = vset.pattern.permute.xlu0 3
      %501 = vperm.xlu0 %500, %v160
      %v502 = vpop.permute.xlu0 %501
      %503 = vset.pattern.permute.xlu0 3
      %504 = vperm.xlu0 %503, %v161
      %v505 = vpop.permute.xlu0 %504
      %506 = vset.pattern.permute.xlu0 3
      %507 = vperm.xlu0 %506, %v162
      %v508 = vpop.permute.xlu0 %507
      %509 = vset.pattern.permute.xlu0 3
      %510 = vperm.xlu0 %509, %v163
      %v511 = vpop.permute.xlu0 %510
      %512 = vset.pattern.permute.xlu0 3
      %513 = vperm.xlu0 %512, %v164
      %v514 = vpop.permute.xlu0 %513
      %515 = vset.pattern.permute.xlu0 3
      %516 = vperm.xlu0 %515, %v165
      %v517 = vpop.permute.xlu0 %516
      %vm518 = vcmp.eq.s32.totalorder %v472, %v148
      %vm519 = vcmp.eq.s32.totalorder %v472, %v149
      %vm520 = vcmp.eq.s32.totalorder %v475, %v148
      %vm521 = vcmp.eq.s32.totalorder %v475, %v149
      %vm522 = vcmp.eq.s32.totalorder %v478, %v148
      %vm523 = vcmp.eq.s32.totalorder %v478, %v149
      %vm524 = vcmp.eq.s32.totalorder %v481, %v148
      %vm525 = vcmp.eq.s32.totalorder %v481, %v149
      %vm526 = vcmp.eq.s32.totalorder %v484, %v148
      %vm527 = vcmp.eq.s32.totalorder %v484, %v149
      %vm528 = vcmp.eq.s32.totalorder %v487, %v148
      %vm529 = vcmp.eq.s32.totalorder %v487, %v149
      %vm530 = vcmp.eq.s32.totalorder %v490, %v148
      %vm531 = vcmp.eq.s32.totalorder %v490, %v149
      %vm532 = vcmp.eq.s32.totalorder %v493, %v148
      %vm533 = vcmp.eq.s32.totalorder %v493, %v149
      %vm534 = vcmp.eq.s32.totalorder %v496, %v148
      %vm535 = vcmp.eq.s32.totalorder %v496, %v149
      %vm536 = vcmp.eq.s32.totalorder %v499, %v148
      %vm537 = vcmp.eq.s32.totalorder %v499, %v149
      %vm538 = vcmp.eq.s32.totalorder %v502, %v148
      %vm539 = vcmp.eq.s32.totalorder %v502, %v149
      %vm540 = vcmp.eq.s32.totalorder %v505, %v148
      %vm541 = vcmp.eq.s32.totalorder %v505, %v149
      %vm542 = vcmp.eq.s32.totalorder %v508, %v148
      %vm543 = vcmp.eq.s32.totalorder %v508, %v149
      %vm544 = vcmp.eq.s32.totalorder %v511, %v148
      %vm545 = vcmp.eq.s32.totalorder %v511, %v149
      %vm546 = vcmp.eq.s32.totalorder %v514, %v148
      %vm547 = vcmp.eq.s32.totalorder %v514, %v149
      %vm548 = vcmp.eq.s32.totalorder %v517, %v148
      %vm549 = vcmp.eq.s32.totalorder %v517, %v149
      %vm550 = vmor %vm438, %vm518
      %vm551 = vmor %vm439, %vm519
      %vm552 = vmor %vm440, %vm520
      %vm553 = vmor %vm441, %vm521
      %vm554 = vmor %vm442, %vm522
      %vm555 = vmor %vm443, %vm523
      %vm556 = vmor %vm444, %vm524
      %vm557 = vmor %vm445, %vm525
      %vm558 = vmor %vm446, %vm526
      %vm559 = vmor %vm447, %vm527
      %vm560 = vmor %vm448, %vm528
      %vm561 = vmor %vm449, %vm529
      %vm562 = vmor %vm450, %vm530
      %vm563 = vmor %vm451, %vm531
      %vm564 = vmor %vm452, %vm532
      %vm565 = vmor %vm453, %vm533
      %vm566 = vmor %vm454, %vm534
      %vm567 = vmor %vm455, %vm535
      %vm568 = vmor %vm456, %vm536
      %vm569 = vmor %vm457, %vm537
      %vm570 = vmor %vm458, %vm538
      %vm571 = vmor %vm459, %vm539
      %vm572 = vmor %vm460, %vm540
      %vm573 = vmor %vm461, %vm541
      %vm574 = vmor %vm462, %vm542
      %vm575 = vmor %vm463, %vm543
      %vm576 = vmor %vm464, %vm544
      %vm577 = vmor %vm465, %vm545
      %vm578 = vmor %vm466, %vm546
      %vm579 = vmor %vm467, %vm547
      %vm580 = vmor %vm468, %vm548
      %vm581 = vmor %vm469, %vm549
      %v582 = vsel %vm550, 1, 0
      %v583 = vsel %vm551, 1, 0
      %v584 = vsel %vm552, 1, 0
      %v585 = vsel %vm553, 1, 0
      %v586 = vsel %vm554, 1, 0
      %v587 = vsel %vm555, 1, 0
      %v588 = vsel %vm556, 1, 0
      %v589 = vsel %vm557, 1, 0
      %v590 = vsel %vm558, 1, 0
      %v591 = vsel %vm559, 1, 0
      %v592 = vsel %vm560, 1, 0
      %v593 = vsel %vm561, 1, 0
      %v594 = vsel %vm562, 1, 0
      %v595 = vsel %vm563, 1, 0
      %v596 = vsel %vm564, 1, 0
      %v597 = vsel %vm565, 1, 0
      %v598 = vsel %vm566, 1, 0
      %v599 = vsel %vm567, 1, 0
      %v600 = vsel %vm568, 1, 0
      %v601 = vsel %vm569, 1, 0
      %v602 = vsel %vm570, 1, 0
      %v603 = vsel %vm571, 1, 0
      %v604 = vsel %vm572, 1, 0
      %v605 = vsel %vm573, 1, 0
      %v606 = vsel %vm574, 1, 0
      %v607 = vsel %vm575, 1, 0
      %v608 = vsel %vm576, 1, 0
      %v609 = vsel %vm577, 1, 0
      %v610 = vsel %vm578, 1, 0
      %v611 = vsel %vm579, 1, 0
      %v612 = vsel %vm580, 1, 0
      %v613 = vsel %vm581, 1, 0
      %v614 = vcvt.s32.f32 %v582
      %v615 = vcvt.s32.f32 %v583
      %v616 = vcvt.s32.f32 %v584
      %v617 = vcvt.s32.f32 %v585
      %v618 = vcvt.s32.f32 %v586
      %v619 = vcvt.s32.f32 %v587
      %v620 = vcvt.s32.f32 %v588
      %v621 = vcvt.s32.f32 %v589
      %v622 = vcvt.s32.f32 %v590
      %v623 = vcvt.s32.f32 %v591
      %v624 = vcvt.s32.f32 %v592
      %v625 = vcvt.s32.f32 %v593
      %v626 = vcvt.s32.f32 %v594
      %v627 = vcvt.s32.f32 %v595
      %v628 = vcvt.s32.f32 %v596
      %v629 = vcvt.s32.f32 %v597
      %v630 = vcvt.s32.f32 %v598
      %v631 = vcvt.s32.f32 %v599
      %v632 = vcvt.s32.f32 %v600
      %v633 = vcvt.s32.f32 %v601
      %v634 = vcvt.s32.f32 %v602
      %v635 = vcvt.s32.f32 %v603
      %v636 = vcvt.s32.f32 %v604
      %v637 = vcvt.s32.f32 %v605
      %v638 = vcvt.s32.f32 %v606
      %v639 = vcvt.s32.f32 %v607
      %v640 = vcvt.s32.f32 %v608
      %v641 = vcvt.s32.f32 %v609
      %v642 = vcvt.s32.f32 %v610
      %v643 = vcvt.s32.f32 %v611
      %v644 = vcvt.s32.f32 %v612
      %v645 = vcvt.s32.f32 %v613
      %v646 = vld [vmem:[%s1] sm:$0xff]
      %v647 = vld [vmem:[%s1 + $0x8] sm:$0xff]
      %v648 = vld [vmem:[%s1 + $0x10] sm:$0xff]
      %v649 = vld [vmem:[%s1 + $0x18] sm:$0xff]
      %v650 = vld [vmem:[%s1 + $0x20] sm:$0xff]
      %v651 = vld [vmem:[%s1 + $0x28] sm:$0xff]
      %v652 = vld [vmem:[%s1 + $0x30] sm:$0xff]
      %v653 = vld [vmem:[%s1 + $0x38] sm:$0xff]
      %v654 = vld [vmem:[%s1 + $0x40] sm:$0xff]
      %v655 = vld [vmem:[%s1 + $0x48] sm:$0xff]
      %v656 = vld [vmem:[%s1 + $0x50] sm:$0xff]
      %v657 = vld [vmem:[%s1 + $0x58] sm:$0xff]
      %v658 = vld [vmem:[%s1 + $0x60] sm:$0xff]
      %v659 = vld [vmem:[%s1 + $0x68] sm:$0xff]
      %v660 = vld [vmem:[%s1 + $0x70] sm:$0xff]
      %v661 = vld [vmem:[%s1 + $0x78] sm:$0xff]
      %v662 = vld [vmem:[%s1 + $0x80] sm:$0xff]
      %v663 = vld [vmem:[%s1 + $0x88] sm:$0xff]
      %v664 = vld [vmem:[%s1 + $0x90] sm:$0xff]
      %v665 = vld [vmem:[%s1 + $0x98] sm:$0xff]
      %v666 = vld [vmem:[%s1 + $0xa0] sm:$0xff]
      %v667 = vld [vmem:[%s1 + $0xa8] sm:$0xff]
      %v668 = vld [vmem:[%s1 + $0xb0] sm:$0xff]
      %v669 = vld [vmem:[%s1 + $0xb8] sm:$0xff]
      %v670 = vld [vmem:[%s1 + $0xc0] sm:$0xff]
      %v671 = vld [vmem:[%s1 + $0xc8] sm:$0xff]
      %v672 = vld [vmem:[%s1 + $0xd0] sm:$0xff]
      %v673 = vld [vmem:[%s1 + $0xd8] sm:$0xff]
      %v674 = vld [vmem:[%s1 + $0xe0] sm:$0xff]
      %v675 = vld [vmem:[%s1 + $0xe8] sm:$0xff]
      %v676 = vld [vmem:[%s1 + $0xf0] sm:$0xff]
      %v677 = vld [vmem:[%s1 + $0xf8] sm:$0xff]
      %678 = vmatpush.msra.mxu0 %v661
      %679 = vmatpush.msra.mxu0 %v660
      %680 = vmatpush.msra.mxu0 %v659
      %681 = vmatpush.msra.mxu0 %v658
      %682 = vmatpush.msra.mxu0 %v657
      %683 = vmatpush.msra.mxu0 %v656
      %684 = vmatpush.msra.mxu0 %v655
      %685 = vmatpush.msra.mxu0 %v654
      %686 = vmatpush.msra.mxu0 %v653
      %687 = vmatpush.msra.mxu0 %v652
      %688 = vmatpush.msra.mxu0 %v651
      %689 = vmatpush.msra.mxu0 %v650
      %690 = vmatpush.msra.mxu0 %v649
      %691 = vmatpush.msra.mxu0 %v648
      %692 = vmatpush.msra.mxu0 %v647
      %693 = vmatpush.msra.mxu0 %v646
      %694 = vmatmul.f32.gmra.mxu0 %v614
      %v695 = vpop.f32.mrf.mxu0
      %v696 = vadd.f32 0.0, %v695
      %697 = vmatmul.f32.gmra.mxu0 %v616
      %v698 = vpop.f32.mrf.mxu0
      %v699 = vadd.f32 0.0, %v698
      %700 = vmatmul.f32.gmra.mxu0 %v618
      %v701 = vpop.f32.mrf.mxu0
      %v702 = vadd.f32 0.0, %v701
      %703 = vmatmul.f32.gmra.mxu0 %v620
      %v704 = vpop.f32.mrf.mxu0
      %v705 = vadd.f32 0.0, %v704
      %706 = vmatmul.f32.gmra.mxu0 %v622
      %v707 = vpop.f32.mrf.mxu0
      %v708 = vadd.f32 0.0, %v707
      %709 = vmatmul.f32.gmra.mxu0 %v624
      %v710 = vpop.f32.mrf.mxu0
      %v711 = vadd.f32 0.0, %v710
      %712 = vmatmul.f32.gmra.mxu0 %v626
      %v713 = vpop.f32.mrf.mxu0
      %v714 = vadd.f32 0.0, %v713
      %715 = vmatmul.f32.gmra.mxu0 %v628
      %v716 = vpop.f32.mrf.mxu0
      %v717 = vadd.f32 0.0, %v716
      %718 = vmatmul.f32.gmra.mxu0 %v630
      %v719 = vpop.f32.mrf.mxu0
      %v720 = vadd.f32 0.0, %v719
      %721 = vmatmul.f32.gmra.mxu0 %v632
      %v722 = vpop.f32.mrf.mxu0
      %v723 = vadd.f32 0.0, %v722
      %724 = vmatmul.f32.gmra.mxu0 %v634
      %v725 = vpop.f32.mrf.mxu0
      %v726 = vadd.f32 0.0, %v725
      %727 = vmatmul.f32.gmra.mxu0 %v636
      %v728 = vpop.f32.mrf.mxu0
      %v729 = vadd.f32 0.0, %v728
      %730 = vmatmul.f32.gmra.mxu0 %v638
      %v731 = vpop.f32.mrf.mxu0
      %v732 = vadd.f32 0.0, %v731
      %733 = vmatmul.f32.gmra.mxu0 %v640
      %v734 = vpop.f32.mrf.mxu0
      %v735 = vadd.f32 0.0, %v734
      %736 = vmatmul.f32.gmra.mxu0 %v642
      %v737 = vpop.f32.mrf.mxu0
      %v738 = vadd.f32 0.0, %v737
      %739 = vmatmul.f32.gmra.mxu0 %v644
      %v740 = vpop.f32.mrf.mxu0
      %v741 = vadd.f32 0.0, %v740
      %742 = vdwg.mxu0
      %743 = vmatpush.msra.mxu0 %v677
      %744 = vmatpush.msra.mxu0 %v676
      %745 = vmatpush.msra.mxu0 %v675
      %746 = vmatpush.msra.mxu0 %v674
      %747 = vmatpush.msra.mxu0 %v673
      %748 = vmatpush.msra.mxu0 %v672
      %749 = vmatpush.msra.mxu0 %v671
      %750 = vmatpush.msra.mxu0 %v670
      %751 = vmatpush.msra.mxu0 %v669
      %752 = vmatpush.msra.mxu0 %v668
      %753 = vmatpush.msra.mxu0 %v667
      %754 = vmatpush.msra.mxu0 %v666
      %755 = vmatpush.msra.mxu0 %v665
      %756 = vmatpush.msra.mxu0 %v664
      %757 = vmatpush.msra.mxu0 %v663
      %758 = vmatpush.msra.mxu0 %v662
      %759 = vmatmul.f32.gmra.mxu0 %v615
      %v760 = vpop.f32.mrf.mxu0
      %v761 = vadd.f32 %v696, %v760
      %762 = vmatmul.f32.gmra.mxu0 %v617
      %v763 = vpop.f32.mrf.mxu0
      %v764 = vadd.f32 %v699, %v763
      %765 = vmatmul.f32.gmra.mxu0 %v619
      %v766 = vpop.f32.mrf.mxu0
      %v767 = vadd.f32 %v702, %v766
      %768 = vmatmul.f32.gmra.mxu0 %v621
      %v769 = vpop.f32.mrf.mxu0
      %v770 = vadd.f32 %v705, %v769
      %771 = vmatmul.f32.gmra.mxu0 %v623
      %v772 = vpop.f32.mrf.mxu0
      %v773 = vadd.f32 %v708, %v772
      %774 = vmatmul.f32.gmra.mxu0 %v625
      %v775 = vpop.f32.mrf.mxu0
      %v776 = vadd.f32 %v711, %v775
      %777 = vmatmul.f32.gmra.mxu0 %v627
      %v778 = vpop.f32.mrf.mxu0
      %v779 = vadd.f32 %v714, %v778
      %780 = vmatmul.f32.gmra.mxu0 %v629
      %v781 = vpop.f32.mrf.mxu0
      %v782 = vadd.f32 %v717, %v781
      %783 = vmatmul.f32.gmra.mxu0 %v631
      %v784 = vpop.f32.mrf.mxu0
      %v785 = vadd.f32 %v720, %v784
      %786 = vmatmul.f32.gmra.mxu0 %v633
      %v787 = vpop.f32.mrf.mxu0
      %v788 = vadd.f32 %v723, %v787
      %789 = vmatmul.f32.gmra.mxu0 %v635
      %v790 = vpop.f32.mrf.mxu0
      %v791 = vadd.f32 %v726, %v790
      %792 = vmatmul.f32.gmra.mxu0 %v637
      %v793 = vpop.f32.mrf.mxu0
      %v794 = vadd.f32 %v729, %v793
      %795 = vmatmul.f32.gmra.mxu0 %v639
      %v796 = vpop.f32.mrf.mxu0
      %v797 = vadd.f32 %v732, %v796
      %798 = vmatmul.f32.gmra.mxu0 %v641
      %v799 = vpop.f32.mrf.mxu0
      %v800 = vadd.f32 %v735, %v799
      %801 = vmatmul.f32.gmra.mxu0 %v643
      %v802 = vpop.f32.mrf.mxu0
      %v803 = vadd.f32 %v738, %v802
      %804 = vmatmul.f32.gmra.mxu0 %v645
      %v805 = vpop.f32.mrf.mxu0
      %v806 = vadd.f32 %v741, %v805
      %807 = vdwg.mxu0
      %808 = vst [vmem:[%s145] sm:$0xff] %v761
      %809 = vst [vmem:[%s145 + $0x8] sm:$0xff] %v764
      %810 = vst [vmem:[%s145 + $0x10] sm:$0xff] %v767
      %811 = vst [vmem:[%s145 + $0x18] sm:$0xff] %v770
      %812 = vst [vmem:[%s145 + $0x20] sm:$0xff] %v773
      %813 = vst [vmem:[%s145 + $0x28] sm:$0xff] %v776
      %814 = vst [vmem:[%s145 + $0x30] sm:$0xff] %v779
      %815 = vst [vmem:[%s145 + $0x38] sm:$0xff] %v782
      %816 = vst [vmem:[%s145 + $0x40] sm:$0xff] %v785
      %817 = vst [vmem:[%s145 + $0x48] sm:$0xff] %v788
      %818 = vst [vmem:[%s145 + $0x50] sm:$0xff] %v791
      %819 = vst [vmem:[%s145 + $0x58] sm:$0xff] %v794
      %820 = vst [vmem:[%s145 + $0x60] sm:$0xff] %v797
      %821 = vst [vmem:[%s145 + $0x68] sm:$0xff] %v800
      %822 = vst [vmem:[%s145 + $0x70] sm:$0xff] %v803
      %823 = vst [vmem:[%s145 + $0x78] sm:$0xff] %v806
      %s824 = smul.u32 16, %s13
      %p825 = scmp.lt.s32.totalorder %s824, 31
      %s826 = scalar_select %p825, %s824, 31
      %s827 = smul.addr %s826, 8
      %s828 = scalar_lea.vmem %s2, %s827
      // Predicated region
      $region29: #{embedding_ema_forward.1} parent=27 // pred_check
        %p829 = pneg %p78
      $region30: #{embedding_ema_forward.1} parent=27 // pred_check_branch
        %831 = sbr.rel (%p829) target = $region32
      $region31: #{embedding_ema_forward.1} parent=27 // pred_region
        %s832 = smul.u32 16, %s13
      $region32: #{embedding_ema_forward.1} parent=27 // pred_fallthru
        _
    $region28: #{embedding_ema_forward.1} parent=5 // pred_fallthru
      _
    %p833 = scmp.le.s32.totalorder 2, %s8
    // Predicated region
    $region33: #{embedding_ema_forward.1} parent=5 // pred_check
      %p834 = pneg %p833
    $region34: #{embedding_ema_forward.1} parent=5 // pred_check_branch
      %836 = sbr.rel (%p834) target = $region36
    $region35: #{embedding_ema_forward.1} parent=5 // pred_region
      %s837 = ssub.s32 %s8, 2
      // Predicated region
      $region37: #{embedding_ema_forward.1} parent=35 // pred_check
        %p838 = pneg %p84
      $region38: #{embedding_ema_forward.1} parent=35 // pred_check_branch
        %840 = sbr.rel (%p838) target = $region40
      $region39: #{embedding_ema_forward.1} parent=35 // pred_region
        %s841 = smul.u32 16, %s14
        %p842 = scmp.lt.s32.totalorder %s841, 31
        %s843 = scalar_select %p842, %s841, 31
        %s844 = smul.addr %s843, 8
        %s845 = scalar_lea.vmem %s2, %s844
      $region40: #{embedding_ema_forward.1} parent=35 // pred_fallthru
        _
    $region36: #{embedding_ema_forward.1} parent=5 // pred_fallthru
      _
  $region6: #{embedding_ema_forward.1} parent=0 // loop_footer
    %s12 = sadd.s32 1, %s8
  $region7: #{embedding_ema_forward.1} parent=0 // loop_footer_branch
    %7 = sbr.rel target = $region3
  $region8: #{embedding_ema_forward.1} parent=0 // loop_exit
    _

</llo_original>
